<compile_context>
chip_gen: v5e
topology: v5e:2x2
jax: 0.10.0
libtpu: 0.0.40
codegen_flags: <defaults>
</compile_context>

<pallas_src>
import math

import jax
import jax.numpy as jnp
from jax.experimental import pallas as pl
from jax.experimental.pallas import tpu as pltpu

LOSS_N = 1.0
_LANES = 128


def _sublane_multiple(dtype) -> int:
    # vreg sublane packing: 8 rows for 32-bit, 16 for 16-bit, 32 for 8-bit.
    return {4: 8, 2: 16, 1: 32}.get(jnp.dtype(dtype).itemsize, 8)


def _sq_rel_err_f32(y, yp):
    y = y.astype(jnp.float32)
    yp = yp.astype(jnp.float32)
    r = (yp - y) / (jnp.abs(y) + jnp.float32(LOSS_N))
    return r * r


def _make_loss_kernel(tile_rows: int, inner_steps: int, full_tiles: int,
                      valid_rows: int, acc_sub: int, need_mask: bool):
    def loss_kernel(y_ref, yp_ref, o_ref):
        p = pl.program_id(0)
        i = pl.program_id(1)

        @pl.when(i == 0)
        def _():
            o_ref[...] = jnp.zeros_like(o_ref)

        # In-kernel upcast keeps HBM traffic at the input dtype width.
        sq = _sq_rel_err_f32(y_ref[...], yp_ref[...])

        def accumulate(vals):
            # Collapse the tile onto an (acc_sub, 128) resident accumulator:
            # acc_sub/8 independent vreg add chains instead of one deep chain.
            partial = jnp.sum(
                vals.reshape(tile_rows // acc_sub, acc_sub, _LANES), axis=0)
            o_ref[...] += partial.reshape(1, acc_sub, _LANES)

        if need_mask:
            # Logical (unclamped) tile index; only the last ragged tile and
            # duplicated (clamped) tiles pay for the mask, gated by pl.when.
            t = p * inner_steps + i

            @pl.when(t < full_tiles)
            def _():
                accumulate(sq)

            @pl.when(t >= full_tiles)
            def _():
                local_row = jax.lax.broadcasted_iota(
                    jnp.int32, (tile_rows, 1), 0)
                valid = (t * tile_rows + local_row) < valid_rows
                accumulate(jnp.where(valid, sq, jnp.float32(0.0)))
        else:
            accumulate(sq)

    return loss_kernel


def model_loss_pallas(y, yp, *, tile_rows: int = 8192, num_parallel: int = 2):
    """Computes mean(((yp - y) / (|y| + LOSS_N))**2) with a Pallas TPU kernel."""
    assert y.shape == yp.shape, "y and yp must have the same shape"
    total_n = math.prod(y.shape)
    assert total_n > 0

    y_flat = jnp.ravel(y)
    yp_flat = jnp.ravel(yp)

    s_mult = max(_sublane_multiple(y.dtype), _sublane_multiple(yp.dtype))
    chunk = s_mult * _LANES
    aligned_n = (total_n // chunk) * chunk
    rows = aligned_n // _LANES

    # Ragged tail (< s_mult*128 elements): pure-JAX sum, no pad / extra pass.
    tail_sum = jnp.float32(0.0)
    if aligned_n != total_n:
        tail_sum = jnp.sum(_sq_rel_err_f32(y_flat[aligned_n:],
                                           yp_flat[aligned_n:]))

    if rows == 0:
        # Degenerate tiny input: nothing lane-aligned to stream through the
        # kernel; the whole thing was handled by the tail sum above.
        return tail_sum / jnp.float32(total_n)

    y2d = y_flat[:aligned_n].reshape(rows, _LANES)
    yp2d = yp_flat[:aligned_n].reshape(rows, _LANES)

    # Cap each input tile at 8 MiB so 2 inputs x 2 pipeline buffers <= 32 MiB:
    # safe on v5e/v6e (128 MiB physical) and v7x (64 MiB physical) alike.
    max_tile_bytes = 8 << 20
    in_itemsize = max(jnp.dtype(y.dtype).itemsize, jnp.dtype(yp.dtype).itemsize)
    max_rows_by_vmem = max(
        s_mult, (max_tile_bytes // (_LANES * in_itemsize)) // s_mult * s_mult)
    eff_rows = min(tile_rows, rows, max_rows_by_vmem)
    eff_rows = max(s_mult, (eff_rows // s_mult) * s_mult)

    total_tiles = -(-rows // eff_rows)
    full_tiles = rows // eff_rows
    # Only split across cores when there is actually more than one tile.
    P = max(1, min(int(num_parallel), total_tiles))
    inner = -(-total_tiles // P)
    need_mask = (P * inner != total_tiles) or (full_tiles != total_tiles)

    # Accumulator sublane height: up to 32 rows (4 independent vreg chains).
    acc_sub = 32 if eff_rows % 32 == 0 else (16 if eff_rows % 16 == 0 else 8)

    def in_map(p, i):
        # Clamp so the block DMA never goes past the last tile; duplicated
        # work from the P split is masked to zero inside the kernel.
        return (jnp.minimum(p * inner + i, total_tiles - 1), 0)

    # Explicit VMEM budget: 2 pipeline buffers x (y tile + yp tile) + slack.
    tile_in_bytes = eff_rows * _LANES * (
        jnp.dtype(y.dtype).itemsize + jnp.dtype(yp.dtype).itemsize)
    vmem_limit = max(2 * tile_in_bytes + (4 << 20), 16 << 20)

    partials = pl.pallas_call(
        _make_loss_kernel(eff_rows, inner, full_tiles, rows, acc_sub,
                          need_mask),
        out_shape=jax.ShapeDtypeStruct((P, acc_sub, _LANES), jnp.float32),
        grid_spec=pltpu.PrefetchScalarGridSpec(
            num_scalar_prefetch=0,
            grid=(P, inner),
            in_specs=[
                pl.BlockSpec((eff_rows, _LANES), in_map),
                pl.BlockSpec((eff_rows, _LANES), in_map),
            ],
            out_specs=pl.BlockSpec((1, acc_sub, _LANES),
                                   lambda p, i: (p, 0, 0)),
        ),
        compiler_params=pltpu.CompilerParams(
            dimension_semantics=("parallel", "arbitrary"),
            vmem_limit_bytes=int(vmem_limit),
        ),
    )(y2d, yp2d)

    return (jnp.sum(partials) + tail_sum) / jnp.float32(total_n)


def _ref_loss(y, yp):
    return jnp.mean(_sq_rel_err_f32(y, yp))


if __name__ == "__main__":
    key = jax.random.PRNGKey(0)
    k1, k2, k3, k4, k5, k6 = jax.random.split(key, 6)

    # NCHW-shaped inputs: batch=2, channels=4, spatial=16x16 (lane-aligned).
    y = jax.random.normal(k1, (2, 4, 16, 16), dtype=jnp.float32)
    yp = jax.random.normal(k2, (2, 4, 16, 16), dtype=jnp.float32)
    loss = model_loss_pallas(y, yp)
    jax.block_until_ready(loss)
    ref = _ref_loss(y, yp)
    assert jnp.allclose(loss, ref, rtol=1e-5, atol=1e-6), (loss, ref)

    # Ragged case: numel not a multiple of 128 (exercises the pure-JAX tail).
    y2 = jax.random.normal(k3, (3, 5, 7, 11), dtype=jnp.float32)
    yp2 = jax.random.normal(k4, (3, 5, 7, 11), dtype=jnp.float32)
    loss2 = model_loss_pallas(y2, yp2, tile_rows=8)
    jax.block_until_ready(loss2)
    ref2 = _ref_loss(y2, yp2)
    assert jnp.allclose(loss2, ref2, rtol=1e-5, atol=1e-6), (loss2, ref2)

    # Odd tile count + 2-way core split (exercises the clamped-duplicate
    # masking path gated by pl.when).
    y3 = jax.random.normal(k5, (3, 4, 16, 16), dtype=jnp.float32)
    yp3 = jax.random.normal(k6, (3, 4, 16, 16), dtype=jnp.float32)
    loss3 = model_loss_pallas(y3, yp3, tile_rows=8, num_parallel=2)
    jax.block_until_ready(loss3)
    ref3 = _ref_loss(y3, yp3)
    assert jnp.allclose(loss3, ref3, rtol=1e-5, atol=1e-6), (loss3, ref3)

    # bf16 inputs (exercises the 16-row sublane multiple + in-kernel upcast).
    y4 = y.astype(jnp.bfloat16)
    yp4 = yp.astype(jnp.bfloat16)
    loss4 = model_loss_pallas(y4, yp4)
    jax.block_until_ready(loss4)
    ref4 = _ref_loss(y4, yp4)
    assert jnp.allclose(loss4, ref4, rtol=1e-5, atol=1e-6), (loss4, ref4)

    print("KERNEL_OK")
</pallas_src>

<mosaic_0001>
module attributes {stable_mosaic.version = 11 : i64} {
  func.func @loss_kernel(%arg0: i32, %arg1: i32, %arg2: memref<16x128xf32, #tpu.memory_space<vmem>>, %arg3: memref<16x128xf32, #tpu.memory_space<vmem>>, %arg4: memref<1x16x128xf32, #tpu.memory_space<vmem>>) attributes {dimension_semantics = [#tpu.dimension_semantics<parallel>, #tpu.dimension_semantics<arbitrary>], iteration_bounds = array<i64: 1, 1>, scalar_prefetch = 0 : i64, scratch_operands = 0 : i64, tpu.core_type = #tpu.core_type<tc>, window_params = [{transform_indices = @transform_0, window_bounds = array<i64: 16, 128>}, {transform_indices = @transform_1, window_bounds = array<i64: 16, 128>}, {transform_indices = @transform_2, window_bounds = array<i64: 1, 16, 128>}]} {
    %c0_i32 = arith.constant 0 : i32
    %0 = arith.cmpi eq, %arg1, %c0_i32 : i32
    %1 = arith.extui %0 : i1 to i32
    %c0_i32_0 = arith.constant 0 : i32
    %2 = arith.cmpi ne, %1, %c0_i32_0 : i32
    scf.if %2 {
      %cst_11 = arith.constant 0.000000e+00 : f32
      %17 = vector.broadcast %cst_11 : f32 to vector<1x16x128xf32>
      %c0_12 = arith.constant 0 : index
      %c0_13 = arith.constant 0 : index
      %c0_14 = arith.constant 0 : index
      %18 = vector.load %arg4[%c0_12, %c0_13, %c0_14] : memref<1x16x128xf32, #tpu.memory_space<vmem>>, vector<1x16x128xf32>
      tpu.vector_store %arg4[%c0_12, %c0_13, %c0_14], %17 {strides = array<i32>} : memref<1x16x128xf32, #tpu.memory_space<vmem>>, vector<1x16x128xf32>,
    } else {
    }
    %c0 = arith.constant 0 : index
    %c0_1 = arith.constant 0 : index
    %3 = vector.load %arg2[%c0, %c0_1] : memref<16x128xf32, #tpu.memory_space<vmem>>, vector<16x128xf32>
    %c0_2 = arith.constant 0 : index
    %c0_3 = arith.constant 0 : index
    %4 = vector.load %arg3[%c0_2, %c0_3] : memref<16x128xf32, #tpu.memory_space<vmem>>, vector<16x128xf32>
    %5 = arith.subf %4, %3 : vector<16x128xf32>
    %6 = math.absf %3 : vector<16x128xf32>
    %cst = arith.constant 1.000000e+00 : f32
    %7 = vector.broadcast %cst : f32 to vector<16x128xf32>
    %8 = arith.addf %6, %7 : vector<16x128xf32>
    %9 = arith.divf %5, %8 : vector<16x128xf32>
    %10 = arith.mulf %9, %9 : vector<16x128xf32>
    %11 = vector.shape_cast %10 : vector<16x128xf32> to vector<1x16x128xf32>
    %cst_4 = arith.constant dense<0.000000e+00> : vector<16x128xf32>
    %12 = vector.multi_reduction <add>, %11, %cst_4 [0] : vector<1x16x128xf32> to vector<16x128xf32>
    %c0_5 = arith.constant 0 : index
    %c0_6 = arith.constant 0 : index
    %c0_7 = arith.constant 0 : index
    %13 = vector.load %arg4[%c0_5, %c0_6, %c0_7] : memref<1x16x128xf32, #tpu.memory_space<vmem>>, vector<1x16x128xf32>
    %14 = vector.shape_cast %12 : vector<16x128xf32> to vector<1x16x128xf32>
    %15 = arith.addf %13, %14 : vector<1x16x128xf32>
    %c0_8 = arith.constant 0 : index
    %c0_9 = arith.constant 0 : index
    %c0_10 = arith.constant 0 : index
    %16 = vector.load %arg4[%c0_8, %c0_9, %c0_10] : memref<1x16x128xf32, #tpu.memory_space<vmem>>, vector<1x16x128xf32>
    tpu.vector_store %arg4[%c0_8, %c0_9, %c0_10], %15 {strides = array<i32>} : memref<1x16x128xf32, #tpu.memory_space<vmem>>, vector<1x16x128xf32>,
    return
  }
  func.func @transform_0(%arg0: i32, %arg1: i32) -> (i32, i32) {
    %c1_i32 = arith.constant 1 : i32
    %0 = arith.muli %arg0, %c1_i32 : i32
    %1 = arith.addi %0, %arg1 : i32
    %c0_i32 = arith.constant 0 : i32
    %2 = arith.minsi %1, %c0_i32 : i32
    %c0_i32_0 = arith.constant 0 : i32
    %c0_i32_1 = arith.constant 0 : i32
    return %2, %c0_i32_0 : i32, i32
  }
  func.func @transform_1(%arg0: i32, %arg1: i32) -> (i32, i32) {
    %c1_i32 = arith.constant 1 : i32
    %0 = arith.muli %arg0, %c1_i32 : i32
    %1 = arith.addi %0, %arg1 : i32
    %c0_i32 = arith.constant 0 : i32
    %2 = arith.minsi %1, %c0_i32 : i32
    %c0_i32_0 = arith.constant 0 : i32
    %c0_i32_1 = arith.constant 0 : i32
    return %2, %c0_i32_0 : i32, i32
  }
  func.func @transform_2(%arg0: i32, %arg1: i32) -> (i32, i32, i32) {
    %c0_i32 = arith.constant 0 : i32
    %c0_i32_0 = arith.constant 0 : i32
    %c0_i32_1 = arith.constant 0 : i32
    return %arg0, %c0_i32, %c0_i32_0 : i32, i32, i32
  }
}

</mosaic_0001>

<llo_original>
// kernel: tpu_custom_call.1
$region0: #{tpu_custom_call.1}
  #allocation0 [shape = 'u32[]', space=smem, size = 0x4, offset = 0x4, fixed_abs, tag = 'smem constant byte address 0x4 - core index']
  #allocation1 [shape = 'u32[72,128]{1,0:T(1,128)}', space=vmem, size = 0x9000, scoped, tag = 'internal scratch']
  %s0 = inlined_call_operand.hbm [shape: f32[16,128], index: 0, kind: input, shape index: {}]
  %s1 = inlined_call_operand.hbm [shape: f32[16,128], index: 1, kind: input, shape index: {}]
  %s2 = inlined_call_operand.hbm [shape: f32[1,16,128], index: 2, kind: output, shape index: {}]
  %s3 = sld [smem:[#allocation0]]
  $region30: #{tpu_custom_call.1} parent=0
    _
  %s5 = ssub.s32 1, %s3
  %s6 = scalar_select 0, %s5, %s3
  $region1: #{tpu_custom_call.1} parent=0
    #allocation2 [shape = 'u8[8192]{0}', space=vmem, size = 0x2000, scoped, tag = 'input window, operand 0, single buffered']
    #allocation3 [shape = 's32[1]{0}', space=sflag, size = 0x4, scoped, tag = 'scoped memory for tpu_custom_call.1']
    #allocation4 [shape = 's32[1]{0}', space=sflag, size = 0x4, scoped, tag = 'scoped memory for tpu_custom_call.1']
    #allocation5 [shape = 'u8[8192]{0}', space=vmem, size = 0x2000, scoped, tag = 'input window, operand 1, single buffered']
    #allocation6 [shape = 's32[1]{0}', space=sflag, size = 0x4, scoped, tag = 'scoped memory for tpu_custom_call.1']
    #allocation7 [shape = 'u8[8192]{0}', space=vmem, size = 0x2000, scoped, tag = 'output window, operand 0, single buffered']
    %7 = vsyncpa [#allocation3], 0
    %8 = vsyncpa [#allocation6], 0
    %9 = vsyncpa [#allocation4], 0
    // Predicated region
    $region2: #{tpu_custom_call.1} parent=1 // pred_check
      _
    $region3: #{tpu_custom_call.1} parent=1 // pred_check_branch
      %11 = sbr.rel (0) target = $region5
    $region4: #{tpu_custom_call.1} parent=1 // pred_region
      %s12 = sadd.s32 0, 0
      %p13 = scmp.lt.s32.totalorder %s12, 0
      %s14 = scalar_select %p13, %s12, 0
      %s15 = smul.u32 2, %s14
      %17 = vsyncadd [#allocation3], 0
      %s18 = smul.addr %s15, 8
      %s19 = scalar_lea.hbm %s0, %s18
      %s20 = sshll.u32 %s19, 4
      %s21 = int_to_ptr.hbm [resolvable:$true] %s20
      %s22 = sshll.u32 [#allocation2], 4
      %s23 = int_to_ptr.vmem [resolvable:$true] %s22
      %28 = dma.hbm_to_vmem [thread:$0]  %s21, 256, %s23, [#allocation3], 128, 128, 8
    $region5: #{tpu_custom_call.1} parent=1 // pred_fallthru
      _
    // Predicated region
    $region6: #{tpu_custom_call.1} parent=1 // pred_check
      _
    $region7: #{tpu_custom_call.1} parent=1 // pred_check_branch
      %30 = sbr.rel (0) target = $region9
    $region8: #{tpu_custom_call.1} parent=1 // pred_region
      %s31 = sadd.s32 0, 0
      %p32 = scmp.lt.s32.totalorder %s31, 0
      %s33 = scalar_select %p32, %s31, 0
      %s34 = smul.u32 2, %s33
      %36 = vsyncadd [#allocation6], 0
      %s37 = smul.addr %s34, 8
      %s38 = scalar_lea.hbm %s1, %s37
      %s39 = sshll.u32 %s38, 4
      %s40 = int_to_ptr.hbm [resolvable:$true] %s39
      %s41 = sshll.u32 [#allocation5], 4
      %s42 = int_to_ptr.vmem [resolvable:$true] %s41
      %47 = dma.hbm_to_vmem [thread:$0]  %s40, 256, %s42, [#allocation6], 128, 128, 8
    $region9: #{tpu_custom_call.1} parent=1 // pred_fallthru
      _
    // Predicated region
    $region10: #{tpu_custom_call.1} parent=1 // pred_check
      _
    $region11: #{tpu_custom_call.1} parent=1 // pred_check_branch
      %49 = sbr.rel (0) target = $region13
    $region12: #{tpu_custom_call.1} parent=1 // pred_region
      %51 = dma.done [#allocation3], 256
    $region13: #{tpu_custom_call.1} parent=1 // pred_fallthru
      _
    // Predicated region
    $region14: #{tpu_custom_call.1} parent=1 // pred_check
      _
    $region15: #{tpu_custom_call.1} parent=1 // pred_check_branch
      %53 = sbr.rel (0) target = $region17
    $region16: #{tpu_custom_call.1} parent=1 // pred_region
      %55 = dma.done [#allocation6], 256
    $region17: #{tpu_custom_call.1} parent=1 // pred_fallthru
      _
    %s56 = sadd.s32 0, 0
    %p57 = scmp.lt.s32.totalorder %s56, 0
    %s58 = scalar_select %p57, %s56, 0
    %s59 = smul.u32 2, %s58
    %s60 = sadd.s32 0, 0
    %p61 = scmp.lt.s32.totalorder %s60, 0
    %s62 = scalar_select %p61, %s60, 0
    %s63 = smul.u32 2, %s62
    %p64 = scmp.eq.s32.totalorder 0, 0
    // Predicated region
    $region18: #{tpu_custom_call.1} parent=1 // pred_check
      %p65 = pneg %p64
    $region19: #{tpu_custom_call.1} parent=1 // pred_check_branch
      %67 = sbr.rel (%p65) target = $region21
    $region20: #{tpu_custom_call.1} parent=1 // pred_region
      %68 = vst [vmem:[#allocation7] sm:$0xff] 0.0
      %69 = vst [vmem:[#allocation7 + $0x8] sm:$0xff] 0.0
    $region21: #{tpu_custom_call.1} parent=1 // pred_fallthru
      _
    %v70 = vld [vmem:[#allocation2] sm:$0xff]
    %v71 = vld [vmem:[#allocation2 + $0x8] sm:$0xff]
    %v72 = vld [vmem:[#allocation5] sm:$0xff]
    %v73 = vld [vmem:[#allocation5 + $0x8] sm:$0xff]
    %v74 = vsub.f32 %v72, %v70
    %v75 = vsub.f32 %v73, %v71
    %v76 = vand.u32 2147483647, %v70
    %v77 = vand.u32 2147483647, %v71
    %v78 = vadd.f32 %v76, 1.0
    %v79 = vadd.f32 %v77, 1.0
    %v80 = vrcp.pop %v78
    %v81 = vmul.f32 %v78, %v80
    %v82 = vsub.f32 1.0, %v81
    %v83 = vmul.f32 %v80, %v82
    %v84 = vadd.f32 %v80, %v83
    %vm85 = vweird.f32 %v78
    %vm86 = vweird.f32 %v80
    %vm87 = vmor %vm85, %vm86
    %v88 = vsel %vm87, %v80, %v84
    %v89 = vand.u32 2147483647, %v78
    %vm90 = vcmp.eq.f32.partialorder %v89, 8.507059e+37
    %v91 = vand.u32 %v78, 2147483648
    %v92 = vor.u32 1.1754944e-38, %v91
    %v93 = vsel %vm90, %v92, %v88
    %v94 = vmul.f32 %v74, %v93
    %v95 = vrcp.pop %v79
    %v96 = vmul.f32 %v79, %v95
    %v97 = vsub.f32 1.0, %v96
    %v98 = vmul.f32 %v95, %v97
    %v99 = vadd.f32 %v95, %v98
    %vm100 = vweird.f32 %v79
    %vm101 = vweird.f32 %v95
    %vm102 = vmor %vm100, %vm101
    %v103 = vsel %vm102, %v95, %v99
    %v104 = vand.u32 2147483647, %v79
    %vm105 = vcmp.eq.f32.partialorder %v104, 8.507059e+37
    %v106 = vand.u32 %v79, 2147483648
    %v107 = vor.u32 1.1754944e-38, %v106
    %v108 = vsel %vm105, %v107, %v103
    %v109 = vmul.f32 %v75, %v108
    %v110 = vmul.f32 %v94, %v94
    %v111 = vmul.f32 %v109, %v109
    %v112 = vadd.f32 %v110, 0.0
    %v113 = vadd.f32 %v111, 0.0
    %v114 = vld [vmem:[#allocation7] sm:$0xff]
    %v115 = vld [vmem:[#allocation7 + $0x8] sm:$0xff]
    %v116 = vadd.f32 %v114, %v112
    %v117 = vadd.f32 %v115, %v113
    %118 = vst [vmem:[#allocation7] sm:$0xff] %v116
    %119 = vst [vmem:[#allocation7 + $0x8] sm:$0xff] %v117
    // Predicated region
    $region22: #{tpu_custom_call.1} parent=1 // pred_check
      _
    $region23: #{tpu_custom_call.1} parent=1 // pred_check_branch
      %121 = sbr.rel (0) target = $region25
    $region24: #{tpu_custom_call.1} parent=1 // pred_region
      %123 = vsyncadd [#allocation4], 0
      %s124 = sshll.u32 [#allocation7], 4
      %s125 = int_to_ptr.vmem [resolvable:$true] %s124
      %s126 = sshll.u32 %s2, 4
      %s127 = int_to_ptr.hbm [resolvable:$true] %s126
      %132 = dma.vmem_to_hbm [thread:$0]  %s125, 256, %s127, [#allocation4], 128, 128, 8
    $region25: #{tpu_custom_call.1} parent=1 // pred_fallthru
      _
    // Predicated region
    $region26: #{tpu_custom_call.1} parent=1 // pred_check
      _
    $region27: #{tpu_custom_call.1} parent=1 // pred_check_branch
      %134 = sbr.rel (0) target = $region29
    $region28: #{tpu_custom_call.1} parent=1 // pred_region
      %136 = dma.done [#allocation4], 256
    $region29: #{tpu_custom_call.1} parent=1 // pred_fallthru
      _
    %137 = vsyncpa [#allocation3], 1
    %138 = vsyncpa [#allocation6], 1
    %139 = vsyncpa [#allocation4], 1

</llo_original>
